<compile_context>
chip_gen: v6e
topology: v6e:2x2x1
jax: 0.10.0
libtpu: 0.0.40
codegen_flags: <defaults>
</compile_context>

<pallas_src>
import functools

import jax
import jax.numpy as jnp
import numpy as np
from jax.experimental import pallas as pl
from jax.experimental.pallas import tpu as pltpu


# ----------------------------------------------------------------------------
# Graph construction (numpy, constant setup — glue)
# ----------------------------------------------------------------------------
def k_adjacency(A, k, with_self=False, self_factor=1.0):
    I = np.eye(len(A), dtype=np.float32)
    if k == 0:
        return I
    Ak = (np.minimum(np.linalg.matrix_power(A + I, k), 1)
          - np.minimum(np.linalg.matrix_power(A + I, k - 1), 1))
    if with_self:
        Ak = Ak + self_factor * I
    return Ak.astype(np.float32)


def normalize_adjacency_matrix(A):
    deg = A.sum(-1)
    deg_inv_sqrt = np.zeros_like(deg)
    nz = deg > 0
    deg_inv_sqrt[nz] = deg[nz] ** -0.5
    D = np.eye(len(A), dtype=np.float32) * deg_inv_sqrt
    return (D @ A @ D).astype(np.float32)


def build_multiscale_adjacency(A_binary, window_size, scales):
    A_with_I = A_binary.astype(np.float32) + np.eye(len(A_binary), dtype=np.float32)
    A_large = np.tile(A_with_I, (window_size, window_size))          # (W*V, W*V)
    return np.concatenate(
        [normalize_adjacency_matrix(k_adjacency(A_large, k, with_self=True))
         for k in range(scales)],
        axis=0,
    )                                                                # (S*W*V, W*V)


# ----------------------------------------------------------------------------
# Fused Pallas kernel: unfold + (GCN·MLP+BN+ReLU) + (Conv3d+BN)
# ----------------------------------------------------------------------------
def _msg3d_fused_kernel(x_ref, b_ref, mshift_ref, m_ref, oshift_ref, o_ref, *,
                        ws, wstride, wdil, tm_t):
    # x_ref:      (Tp, C*V)        f32   padded time slab for this batch element
    # b_ref:      (ws, C*V, WV*Ce) bf16  fused stage1+2 weight (per window offset)
    # mshift_ref: (1, WV*Ce)       f32   folded MLP bias + BN shift
    # m_ref:      (WV*Ce, V*Co)    bf16  block-diagonal Conv3d+BN weight
    # oshift_ref: (1, V*Co)        f32   folded Conv3d bias + BN shift
    # o_ref:      (tm_t, V*Co)     f32   lane-dense output slab
    t0 = pl.program_id(1) * tm_t

    acc = None
    for w in range(ws):                       # temporal unfold done in VMEM
        start = t0 * wstride + w * wdil
        if wstride == 1:
            xw = x_ref[pl.ds(start, tm_t), :]
        else:
            xw = x_ref[pl.ds(start, tm_t, wstride), :]
        part = jnp.dot(xw.astype(jnp.bfloat16), b_ref[w],
                       preferred_element_type=jnp.float32)
        acc = part if acc is None else acc + part

    # stage 2 epilogue: folded BN shift + ReLU (f32)
    h = jnp.maximum(acc + mshift_ref[...], 0.0)                     # (tm_t, WV*Ce)

    # stage 3: Conv3d(1,ws,1)+BN as one block-diagonal matmul; output lane-dense.
    o = jnp.dot(h.astype(jnp.bfloat16), m_ref[...],
                preferred_element_type=jnp.float32)
    o_ref[...] = (o + oshift_ref[...]).astype(o_ref.dtype)


def _pick_time_tile(t_out, max_tile=128):
    # Full time axis if small; otherwise a multiple-of-8 divisor (block-shape rule).
    if t_out <= max_tile:
        return t_out
    for t in range(max_tile, 7, -1):
        if t % 8 == 0 and t_out % t == 0:
            return t
    return t_out


def msg3d_forward(x, params, cfg):
    N, C_in, T, V = x.shape
    ws = cfg["window_size"]
    wstride = cfg["window_stride"]
    wdil = cfg["window_dilation"]
    C_emb = cfg["embed_channels_out"]
    C_out = cfg["output_channels"]

    pad = (ws + (ws - 1) * (wdil - 1) - 1) // 2
    Tp = T + 2 * pad
    T_out = (Tp - wdil * (ws - 1) - 1) // wstride + 1

    CV = C_in * V
    N1 = ws * V * C_emb
    N2 = V * C_out

    # (N, C, T, V) -> (N, Tp, C*V): time-major slab with (c, v) lanes (glue).
    x_slab = jnp.pad(x.transpose(0, 2, 1, 3).reshape(N, T, CV),
                     ((0, 0), (pad, pad), (0, 0)))

    tm_t = _pick_time_tile(T_out)
    n_tb = T_out // tm_t
    grid = (N, n_tb)

    kernel = functools.partial(_msg3d_fused_kernel,
                               ws=ws, wstride=wstride, wdil=wdil, tm_t=tm_t)

    out = pl.pallas_call(
        kernel,
        out_shape=jax.ShapeDtypeStruct((N, T_out, N2), jnp.float32),
        grid_spec=pl.GridSpec(
            grid=grid,
            in_specs=[
                pl.BlockSpec((None, Tp, CV), lambda n, tb: (n, 0, 0)),
                pl.BlockSpec((ws, CV, N1), lambda n, tb: (0, 0, 0)),
                pl.BlockSpec((1, N1), lambda n, tb: (0, 0)),
                pl.BlockSpec((N1, N2), lambda n, tb: (0, 0)),
                pl.BlockSpec((1, N2), lambda n, tb: (0, 0)),
            ],
            out_specs=pl.BlockSpec((None, tm_t, N2), lambda n, tb: (n, tb, 0)),
        ),
        compiler_params=pltpu.CompilerParams(
            dimension_semantics=("parallel", "parallel")),
    )(x_slab, params["B"], params["mshift"], params["M"], params["oshift"])

    # (N, T_out, V*C_out) -> NCHW (N, C_out, T_out, V)   (final layout glue)
    return out.reshape(N, T_out, V, C_out).transpose(0, 3, 1, 2)


# ----------------------------------------------------------------------------
# Pure-JAX reference (unfused, f32) for correctness checking
# ----------------------------------------------------------------------------
def msg3d_reference(x, params, cfg):
    N, C, T, V = x.shape
    ws = cfg["window_size"]
    wstride = cfg["window_stride"]
    wdil = cfg["window_dilation"]
    S = cfg["scales"]
    C_emb = cfg["embed_channels_out"]
    WV = ws * V

    pad = (ws + (ws - 1) * (wdil - 1) - 1) // 2
    xp = jnp.pad(x, ((0, 0), (0, 0), (pad, pad), (0, 0)))
    Tp = T + 2 * pad
    T_out = (Tp - wdil * (ws - 1) - 1) // wstride + 1
    t_idx = jnp.arange(T_out)[:, None] * wstride + jnp.arange(ws)[None, :] * wdil
    xu = xp[:, :, t_idx, :].reshape(N, C, T_out, WV)

    agg = jnp.einsum('vu,nctu->nctv', params["A_full"], xu)          # (N,C,T,S*WV)
    agg = (agg.reshape(N, C, T_out, S, WV)
              .transpose(0, 3, 1, 2, 4)
              .reshape(N, S * C, T_out, WV))
    y = jnp.einsum('ek,nktv->netv', params["Wm"], agg) + params["bm"][None, :, None, None]
    y = y * params["mlp_scale_vec"][None, :, None, None] + params["beta_m"][None, :, None, None]
    h = jnp.maximum(y, 0.0)                                          # (N,Ce,T,WV)
    h5 = h.reshape(N, C_emb, T_out, ws, V)
    o = jnp.einsum('oew,netwv->notv', params["W3k"], h5) + params["b3"][None, :, None, None]
    o = o * params["out_scale_vec"][None, :, None, None] + params["beta_o"][None, :, None, None]
    return o                                                          # (N,Co,T,V)


# ----------------------------------------------------------------------------
# Deterministic parameter setup (+ fusion / BN folding precompute)
# ----------------------------------------------------------------------------
def init_params(key, cfg, V):
    C_in = cfg["input_channels"]
    C_out = cfg["output_channels"]
    C_emb = cfg["embed_channels_out"]
    S = cfg["scales"]
    ws = cfg["window_size"]
    WV = ws * V
    eps = 1e-5

    # deterministic chain adjacency over the V vertices
    A_binary = np.zeros((V, V), dtype=np.float32)
    for i in range(V - 1):
        A_binary[i, i + 1] = 1.0
        A_binary[i + 1, i] = 1.0
    A_scales = jnp.asarray(build_multiscale_adjacency(A_binary, ws, S))   # (S*WV, WV)

    ks = jax.random.split(key, 10)
    A_res = jax.random.uniform(ks[0], (S * WV, WV), jnp.float32, -1e-6, 1e-6)
    A_full = A_scales + A_res

    # MLP (Conv2d 1x1: S*C_in -> C_emb) + BatchNorm2d(C_emb), eval mode
    Wm = jax.random.normal(ks[1], (C_emb, S * C_in), jnp.float32) * 0.1
    bm = jax.random.normal(ks[2], (C_emb,), jnp.float32) * 0.1
    gamma_m = 1.0 + 0.1 * jax.random.normal(ks[3], (C_emb,), jnp.float32)
    beta_m = 0.1 * jax.random.normal(ks[4], (C_emb,), jnp.float32)
    mlp_scale = gamma_m / jnp.sqrt(1.0 + eps)               # running var=1, mean=0
    mlp_shift = beta_m + bm * mlp_scale

    # Conv3d (C_emb -> C_out, kernel (1, ws, 1)) + BatchNorm2d(C_out), eval mode
    W3 = jax.random.normal(ks[5], (C_out, C_emb, 1, ws, 1), jnp.float32) * 0.1
    b3 = jax.random.normal(ks[6], (C_out,), jnp.float32) * 0.1
    gamma_o = 1.0 + 0.1 * jax.random.normal(ks[7], (C_out,), jnp.float32)
    beta_o = 0.1 * jax.random.normal(ks[8], (C_out,), jnp.float32)
    out_scale = gamma_o / jnp.sqrt(1.0 + eps)
    out_shift = beta_o + b3 * out_scale
    W3k = W3[:, :, 0, :, 0]                                  # (C_out, C_emb, ws)

    # ---- fused stage-1+2 weight: B[(w,c,v), (v',e)] (scale dim pre-contracted) ----
    Wm_r = Wm.reshape(C_emb, S, C_in)                        # [e, s, c]
    A_r = A_full.reshape(S, WV, ws, V)                       # [s, v', w, v]
    B = jnp.einsum('esc,spwv->wcvpe', Wm_r, A_r)             # (ws, C_in, V, WV, C_emb)
    B = (B * mlp_scale).reshape(ws, C_in * V, WV * C_emb).astype(jnp.bfloat16)
    mshift = jnp.tile(mlp_shift, WV).reshape(1, WV * C_emb)  # f32

    # ---- fused stage-3 weight: block-diagonal over vertices, BN scale folded ----
    eye_v = jnp.eye(V, dtype=jnp.float32)
    M = jnp.einsum('oew,uv->wuevo', W3k, eye_v)              # (ws, V, C_emb, V, C_out)
    M = (M * out_scale).reshape(ws * V * C_emb, V * C_out).astype(jnp.bfloat16)
    oshift = jnp.tile(out_shift, V).reshape(1, V * C_out)    # f32

    return {
        # kernel operands
        "B": B, "mshift": mshift, "M": M, "oshift": oshift,
        # raw pieces for the pure-JAX reference
        "A_full": A_full, "Wm": Wm, "bm": bm,
        "mlp_scale_vec": mlp_scale, "beta_m": beta_m,
        "W3k": W3k, "b3": b3,
        "out_scale_vec": out_scale, "beta_o": beta_o,
    }


if __name__ == "__main__":
    # Small config consistent with the module:
    #   input_channels=3, output_channels=16, scales=4, window_size=3,
    #   window_stride=1, window_dilation=1, embed_factor=1, initial_block=True
    cfg = dict(
        input_channels=3,
        output_channels=16,
        scales=4,
        window_size=3,
        window_stride=1,
        window_dilation=1,
        embed_channels_in=3,      # embed_factor == 1 -> input channels
        embed_channels_out=16,    # initial_block=True -> output channels
    )
    N, C_in, T, V = 2, cfg["input_channels"], 16, 8

    key = jax.random.PRNGKey(0)
    kx, kp = jax.random.split(key)
    x = jax.random.normal(kx, (N, C_in, T, V), jnp.float32)
    params = init_params(kp, cfg, V)

    fwd = jax.jit(lambda xx: msg3d_forward(xx, params, cfg))
    out = jax.block_until_ready(fwd(x))

    Tw = T  # stride 1, 'same'-style unfold padding keeps the frame count
    assert out.shape == (N, cfg["output_channels"], Tw, V), out.shape
    assert bool(jnp.all(jnp.isfinite(out)))

    # numerical check against the unfused f32 reference (bf16 weights in the kernel)
    ref = jax.jit(lambda xx: msg3d_reference(xx, params, cfg))(x)
    np.testing.assert_allclose(np.asarray(out), np.asarray(ref), rtol=5e-2, atol=5e-2)

    print("KERNEL_OK")
</pallas_src>

<mosaic_0001>
module attributes {stable_mosaic.version = 11 : i64} {
  func.func @_msg3d_fused_kernel(%arg0: i32, %arg1: i32, %arg2: memref<1x18x24xf32, #tpu.memory_space<vmem>>, %arg3: memref<3x24x384xbf16, #tpu.memory_space<vmem>>, %arg4: memref<1x384xf32, #tpu.memory_space<vmem>>, %arg5: memref<384x128xbf16, #tpu.memory_space<vmem>>, %arg6: memref<1x128xf32, #tpu.memory_space<vmem>>, %arg7: memref<1x16x128xf32, #tpu.memory_space<vmem>>) attributes {dimension_semantics = [#tpu.dimension_semantics<parallel>, #tpu.dimension_semantics<parallel>], iteration_bounds = array<i64: 2, 1>, scalar_prefetch = 0 : i64, scratch_operands = 0 : i64, tpu.core_type = #tpu.core_type<tc>, window_params = [{transform_indices = @transform_0, window_bounds = array<i64: 1, 18, 24>}, {pipeline_mode = #tpu.pipeline_mode<synchronous>, transform_indices = @transform_1, window_bounds = array<i64: 3, 24, 384>}, {pipeline_mode = #tpu.pipeline_mode<synchronous>, transform_indices = @transform_2, window_bounds = array<i64: 1, 384>}, {pipeline_mode = #tpu.pipeline_mode<synchronous>, transform_indices = @transform_3, window_bounds = array<i64: 384, 128>}, {pipeline_mode = #tpu.pipeline_mode<synchronous>, transform_indices = @transform_4, window_bounds = array<i64: 1, 128>}, {transform_indices = @transform_5, window_bounds = array<i64: 1, 16, 128>}]} {
    %c16_i32 = arith.constant 16 : i32
    %0 = arith.muli %arg1, %c16_i32 : i32
    %c1_i32 = arith.constant 1 : i32
    %1 = arith.muli %0, %c1_i32 : i32
    %c0_i32 = arith.constant 0 : i32
    %2 = arith.addi %1, %c0_i32 : i32
    %c0 = arith.constant 0 : index
    %3 = arith.index_cast %2 : i32 to index
    %c0_0 = arith.constant 0 : index
    %4 = vector.load %arg2[%c0, %3, %c0_0] : memref<1x18x24xf32, #tpu.memory_space<vmem>>, vector<1x16x24xf32>
    %5 = vector.shape_cast %4 : vector<1x16x24xf32> to vector<16x24xf32>
    %6 = arith.truncf %5 : vector<16x24xf32> to vector<16x24xbf16>
    %c0_1 = arith.constant 0 : index
    %c0_2 = arith.constant 0 : index
    %c0_3 = arith.constant 0 : index
    %7 = vector.load %arg3[%c0_1, %c0_2, %c0_3] : memref<3x24x384xbf16, #tpu.memory_space<vmem>>, vector<1x24x384xbf16>
    %8 = vector.shape_cast %7 : vector<1x24x384xbf16> to vector<24x384xbf16>
    %cst = arith.constant dense<0.000000e+00> : vector<16x384xf32>
    %9 = tpu.matmul %6, %8, %cst {dimension_numbers = #tpu.dot_dimension_numbers<[1], [0], [0], [1], [0, 0, 1, 1], [], []>} : vector<16x24xbf16>, vector<24x384xbf16>, vector<16x384xf32> -> vector<16x384xf32>
    %c1_i32_4 = arith.constant 1 : i32
    %10 = arith.muli %0, %c1_i32_4 : i32
    %c1_i32_5 = arith.constant 1 : i32
    %11 = arith.addi %10, %c1_i32_5 : i32
    %c0_6 = arith.constant 0 : index
    %12 = arith.index_cast %11 : i32 to index
    %c0_7 = arith.constant 0 : index
    %13 = vector.load %arg2[%c0_6, %12, %c0_7] : memref<1x18x24xf32, #tpu.memory_space<vmem>>, vector<1x16x24xf32>
    %14 = vector.shape_cast %13 : vector<1x16x24xf32> to vector<16x24xf32>
    %15 = arith.truncf %14 : vector<16x24xf32> to vector<16x24xbf16>
    %c1 = arith.constant 1 : index
    %c0_8 = arith.constant 0 : index
    %c0_9 = arith.constant 0 : index
    %16 = vector.load %arg3[%c1, %c0_8, %c0_9] : memref<3x24x384xbf16, #tpu.memory_space<vmem>>, vector<1x24x384xbf16>
    %17 = vector.shape_cast %16 : vector<1x24x384xbf16> to vector<24x384xbf16>
    %cst_10 = arith.constant dense<0.000000e+00> : vector<16x384xf32>
    %18 = tpu.matmul %15, %17, %cst_10 {dimension_numbers = #tpu.dot_dimension_numbers<[1], [0], [0], [1], [0, 0, 1, 1], [], []>} : vector<16x24xbf16>, vector<24x384xbf16>, vector<16x384xf32> -> vector<16x384xf32>
    %19 = arith.addf %9, %18 : vector<16x384xf32>
    %c1_i32_11 = arith.constant 1 : i32
    %20 = arith.muli %0, %c1_i32_11 : i32
    %c2_i32 = arith.constant 2 : i32
    %21 = arith.addi %20, %c2_i32 : i32
    %c0_12 = arith.constant 0 : index
    %22 = arith.index_cast %21 : i32 to index
    %c0_13 = arith.constant 0 : index
    %23 = vector.load %arg2[%c0_12, %22, %c0_13] : memref<1x18x24xf32, #tpu.memory_space<vmem>>, vector<1x16x24xf32>
    %24 = vector.shape_cast %23 : vector<1x16x24xf32> to vector<16x24xf32>
    %25 = arith.truncf %24 : vector<16x24xf32> to vector<16x24xbf16>
    %c2 = arith.constant 2 : index
    %c0_14 = arith.constant 0 : index
    %c0_15 = arith.constant 0 : index
    %26 = vector.load %arg3[%c2, %c0_14, %c0_15] : memref<3x24x384xbf16, #tpu.memory_space<vmem>>, vector<1x24x384xbf16>
    %27 = vector.shape_cast %26 : vector<1x24x384xbf16> to vector<24x384xbf16>
    %cst_16 = arith.constant dense<0.000000e+00> : vector<16x384xf32>
    %28 = tpu.matmul %25, %27, %cst_16 {dimension_numbers = #tpu.dot_dimension_numbers<[1], [0], [0], [1], [0, 0, 1, 1], [], []>} : vector<16x24xbf16>, vector<24x384xbf16>, vector<16x384xf32> -> vector<16x384xf32>
    %29 = arith.addf %19, %28 : vector<16x384xf32>
    %c0_17 = arith.constant 0 : index
    %c0_18 = arith.constant 0 : index
    %30 = vector.load %arg4[%c0_17, %c0_18] : memref<1x384xf32, #tpu.memory_space<vmem>>, vector<1x384xf32>
    %31 = vector.broadcast %30 : vector<1x384xf32> to vector<16x384xf32>
    %32 = arith.addf %29, %31 : vector<16x384xf32>
    %cst_19 = arith.constant 0.000000e+00 : f32
    %33 = vector.broadcast %cst_19 : f32 to vector<16x384xf32>
    %34 = arith.maximumf %32, %33 : vector<16x384xf32>
    %35 = arith.truncf %34 : vector<16x384xf32> to vector<16x384xbf16>
    %c0_20 = arith.constant 0 : index
    %c0_21 = arith.constant 0 : index
    %36 = vector.load %arg5[%c0_20, %c0_21] : memref<384x128xbf16, #tpu.memory_space<vmem>>, vector<384x128xbf16>
    %cst_22 = arith.constant dense<0.000000e+00> : vector<16x128xf32>
    %37 = tpu.matmul %35, %36, %cst_22 {dimension_numbers = #tpu.dot_dimension_numbers<[1], [0], [0], [1], [0, 0, 1, 1], [], []>} : vector<16x384xbf16>, vector<384x128xbf16>, vector<16x128xf32> -> vector<16x128xf32>
    %c0_23 = arith.constant 0 : index
    %c0_24 = arith.constant 0 : index
    %38 = vector.load %arg6[%c0_23, %c0_24] : memref<1x128xf32, #tpu.memory_space<vmem>>, vector<1x128xf32>
    %39 = vector.broadcast %38 : vector<1x128xf32> to vector<16x128xf32>
    %40 = arith.addf %37, %39 : vector<16x128xf32>
    %c0_25 = arith.constant 0 : index
    %c0_26 = arith.constant 0 : index
    %c0_27 = arith.constant 0 : index
    %41 = vector.load %arg7[%c0_25, %c0_26, %c0_27] : memref<1x16x128xf32, #tpu.memory_space<vmem>>, vector<1x16x128xf32>
    %42 = vector.shape_cast %41 : vector<1x16x128xf32> to vector<16x128xf32>
    %43 = vector.shape_cast %40 : vector<16x128xf32> to vector<1x16x128xf32>
    tpu.vector_store %arg7[%c0_25, %c0_26, %c0_27], %43 {strides = array<i32>} : memref<1x16x128xf32, #tpu.memory_space<vmem>>, vector<1x16x128xf32>,
    return
  }
  func.func @transform_0(%arg0: i32, %arg1: i32) -> (i32, i32, i32) {
    %c0_i32 = arith.constant 0 : i32
    %c0_i32_0 = arith.constant 0 : i32
    %c0_i32_1 = arith.constant 0 : i32
    return %arg0, %c0_i32, %c0_i32_0 : i32, i32, i32
  }
  func.func @transform_1(%arg0: i32, %arg1: i32) -> (i32, i32, i32) {
    %c0_i32 = arith.constant 0 : i32
    %c0_i32_0 = arith.constant 0 : i32
    %c0_i32_1 = arith.constant 0 : i32
    %c0_i32_2 = arith.constant 0 : i32
    return %c0_i32, %c0_i32_0, %c0_i32_1 : i32, i32, i32
  }
  func.func @transform_2(%arg0: i32, %arg1: i32) -> (i32, i32) {
    %c0_i32 = arith.constant 0 : i32
    %c0_i32_0 = arith.constant 0 : i32
    %c0_i32_1 = arith.constant 0 : i32
    return %c0_i32, %c0_i32_0 : i32, i32
  }
  func.func @transform_3(%arg0: i32, %arg1: i32) -> (i32, i32) {
    %c0_i32 = arith.constant 0 : i32
    %c0_i32_0 = arith.constant 0 : i32
    %c0_i32_1 = arith.constant 0 : i32
    return %c0_i32, %c0_i32_0 : i32, i32
  }
  func.func @transform_4(%arg0: i32, %arg1: i32) -> (i32, i32) {
    %c0_i32 = arith.constant 0 : i32
    %c0_i32_0 = arith.constant 0 : i32
    %c0_i32_1 = arith.constant 0 : i32
    return %c0_i32, %c0_i32_0 : i32, i32
  }
  func.func @transform_5(%arg0: i32, %arg1: i32) -> (i32, i32, i32) {
    %c0_i32 = arith.constant 0 : i32
    %c0_i32_0 = arith.constant 0 : i32
    return %arg0, %arg1, %c0_i32 : i32, i32, i32
  }
}

</mosaic_0001>

<llo_original>
// kernel: _lambda_.1
$region0: #{_lambda_.1}
  #allocation0 [shape = 'u32[]', space=smem, size = 0x4, offset = 0x4, fixed_abs, tag = 'smem constant byte address 0x4 - core index']
  #allocation1 [shape = 'u32[144,128]{1,0:T(1,128)}', space=vmem, size = 0x12000, scoped, tag = 'internal scratch']
  %s0 = inlined_call_operand.vmem [shape: f32[2,18,24], index: 0, kind: input, shape index: {}]
  %s1 = inlined_call_operand.vmem [shape: bf16[3,24,384], index: 1, kind: input, shape index: {}]
  %s2 = inlined_call_operand.vmem [shape: f32[1,384], index: 2, kind: input, shape index: {}]
  %s3 = inlined_call_operand.hbm [shape: bf16[384,128], index: 3, kind: input, shape index: {}]
  %s4 = inlined_call_operand.vmem [shape: f32[1,128], index: 4, kind: input, shape index: {}]
  %s5 = inlined_call_operand.vmem [shape: f32[2,16,128], index: 5, kind: output, shape index: {}]
  %s6 = sld [smem:[#allocation0]]
  $region57: #{_lambda_.1} parent=0
    _
  %s8 = ssub.s32 1, %s6
  %s9 = scalar_select 0, %s8, %s6
  $region1: #{_lambda_.1} parent=0
    #allocation2 [shape = 'u8[98304]{0}', space=vmem, size = 0x18000, scoped, tag = 'input window, operand 3, single buffered']
    #allocation3 [shape = 's32[2]{0}', space=sflag, size = 0x8, scoped, tag = 'scoped memory for _lambda_.1']
    %10 = vsyncpa [#allocation3], 0
    loop: start=0, step=1, limit=4
    $region2: #{_lambda_.1} parent=1 // loop_pre_header
      _
    $region3: #{_lambda_.1} parent=1 // loop_header
      %s12 = sphi 0, %s16
      %p13 = scmp.ge.s32.totalorder %s12, 4
      %s19 = sphi 0, %s31
      %s20 = sphi 0, %s27
      %s21 = sphi 0, %s19
      %s22 = sphi 0, %s20
      %s23 = sphi 0, %s21
      %s24 = sphi 0, %s22
      %s34 = sphi 0, %s36
      %s37 = sphi 0, %s34
      %s38 = sphi 0, %s37
      %s54 = sphi 0, %s38
      %s58 = sphi 0, %s58
      %s60 = sphi 0, %s58
      %s61 = sphi 0, %s60
      %s75 = sphi 0, %s61
      %s79 = sphi 0, %s79
      %s81 = sphi 0, %s79
      %s82 = sphi 0, %s81
      %s96 = sphi 0, %s82
      %s100 = sphi 0, %s100
      %s102 = sphi 0, %s100
      %s103 = sphi 0, %s102
      %s117 = sphi 0, %s103
      %s121 = sphi 0, %s121
      %s123 = sphi 0, %s121
      %s124 = sphi 0, %s123
      %s138 = sphi 0, %s124
      %s146 = sphi 0, %s148
      %s149 = sphi 0, %s146
      %s150 = sphi 0, %s149
      %s166 = sphi 0, %s150
    $region4: #{_lambda_.1} parent=1 // loop_header_branch
      %15 = sbr.rel (%p13) target = $region8
    $region5: #{_lambda_.1} parent=1 // loop_body
      %s17 = ssub.s32 %s12, 1
      %s18 = ssub.s32 %s12, 2
      %s25 = sadd.s32 1, %s20
      %p26 = scmp.ge.s32.totalorder %s25, 1
      %s27 = scalar_select %p26, 0, %s25
      %s28 = sadd.s32 1, %s19
      %s29 = scalar_select %p26, %s28, %s19
      %p30 = scmp.ge.s32.totalorder %s29, 2
      %s31 = scalar_select %p30, 0, %s29
      %s32 = ssub.s32 %s19, %s31
      %p33 = scmp.eq.s32.totalorder %s32, 0
      %s35 = sadd.s32 %s34, 1
      %s36 = scalar_select %p33, %s34, %s35
      %p39 = pneg %p33
      %p40 = scmp.eq.s32.totalorder %s12, 1
      %p41 = por %p39, %p40
      %p42 = scmp.ne.s32.totalorder %s34, %s37
      %p43 = scmp.eq.s32.totalorder %s12, 0
      %p44 = por %p42, %p43
      %p45 = scmp.ne.s32.totalorder %s34, %s37
      %p46 = scmp.eq.s32.totalorder %s17, 1
      %p47 = por %p45, %p46
      %p48 = scmp.ne.s32.totalorder %s37, %s38
      %p49 = scmp.eq.s32.totalorder %s17, 0
      %p50 = por %p48, %p49
      %p51 = scmp.ne.s32.totalorder %s37, %s38
      %p52 = scmp.eq.s32.totalorder %s18, 1
      %p53 = por %p51, %p52
      %p55 = scmp.ne.s32.totalorder %s38, %s54
      %p56 = scmp.eq.s32.totalorder %s18, 0
      %p57 = por %p55, %p56
      %s59 = sadd.s32 %s58, 1
      %p62 = scmp.eq.s32.totalorder %s12, 1
      %p63 = scmp.ne.s32.totalorder %s58, %s60
      %p64 = scmp.eq.s32.totalorder %s12, 0
      %p65 = por %p63, %p64
      %p66 = scmp.ne.s32.totalorder %s58, %s60
      %p67 = scmp.eq.s32.totalorder %s17, 1
      %p68 = por %p66, %p67
      %p69 = scmp.ne.s32.totalorder %s60, %s61
      %p70 = scmp.eq.s32.totalorder %s17, 0
      %p71 = por %p69, %p70
      %p72 = scmp.ne.s32.totalorder %s60, %s61
      %p73 = scmp.eq.s32.totalorder %s18, 1
      %p74 = por %p72, %p73
      %p76 = scmp.ne.s32.totalorder %s61, %s75
      %p77 = scmp.eq.s32.totalorder %s18, 0
      %p78 = por %p76, %p77
      %s80 = sadd.s32 %s79, 1
      %p83 = scmp.eq.s32.totalorder %s12, 1
      %p84 = scmp.ne.s32.totalorder %s79, %s81
      %p85 = scmp.eq.s32.totalorder %s12, 0
      %p86 = por %p84, %p85
      %p87 = scmp.ne.s32.totalorder %s79, %s81
      %p88 = scmp.eq.s32.totalorder %s17, 1
      %p89 = por %p87, %p88
      %p90 = scmp.ne.s32.totalorder %s81, %s82
      %p91 = scmp.eq.s32.totalorder %s17, 0
      %p92 = por %p90, %p91
      %p93 = scmp.ne.s32.totalorder %s81, %s82
      %p94 = scmp.eq.s32.totalorder %s18, 1
      %p95 = por %p93, %p94
      %p97 = scmp.ne.s32.totalorder %s82, %s96
      %p98 = scmp.eq.s32.totalorder %s18, 0
      %p99 = por %p97, %p98
      %s101 = sadd.s32 %s100, 1
      %p104 = scmp.eq.s32.totalorder %s12, 1
      %p105 = scmp.ne.s32.totalorder %s100, %s102
      %p106 = scmp.eq.s32.totalorder %s12, 0
      %p107 = por %p105, %p106
      %p108 = scmp.ne.s32.totalorder %s100, %s102
      %p109 = scmp.eq.s32.totalorder %s17, 1
      %p110 = por %p108, %p109
      %p111 = scmp.ne.s32.totalorder %s102, %s103
      %p112 = scmp.eq.s32.totalorder %s17, 0
      %p113 = por %p111, %p112
      %p114 = scmp.ne.s32.totalorder %s102, %s103
      %p115 = scmp.eq.s32.totalorder %s18, 1
      %p116 = por %p114, %p115
      %p118 = scmp.ne.s32.totalorder %s103, %s117
      %p119 = scmp.eq.s32.totalorder %s18, 0
      %p120 = por %p118, %p119
      %s122 = sadd.s32 %s121, 1
      %p125 = scmp.eq.s32.totalorder %s12, 1
      %p126 = scmp.ne.s32.totalorder %s121, %s123
      %p127 = scmp.eq.s32.totalorder %s12, 0
      %p128 = por %p126, %p127
      %p129 = scmp.ne.s32.totalorder %s121, %s123
      %p130 = scmp.eq.s32.totalorder %s17, 1
      %p131 = por %p129, %p130
      %p132 = scmp.ne.s32.totalorder %s123, %s124
      %p133 = scmp.eq.s32.totalorder %s17, 0
      %p134 = por %p132, %p133
      %p135 = scmp.ne.s32.totalorder %s123, %s124
      %p136 = scmp.eq.s32.totalorder %s18, 1
      %p137 = por %p135, %p136
      %p139 = scmp.ne.s32.totalorder %s124, %s138
      %p140 = scmp.eq.s32.totalorder %s18, 0
      %p141 = por %p139, %p140
      %s142 = ssub.s32 %s19, %s31
      %s143 = ssub.s32 %s20, %s27
      %s144 = sor.u32 %s142, %s143
      %p145 = scmp.eq.s32.totalorder %s144, 0
      %s147 = sadd.s32 %s146, 1
      %s148 = scalar_select %p145, %s146, %s147
      %p151 = pneg %p145
      %p152 = scmp.eq.s32.totalorder %s12, 1
      %p153 = por %p151, %p152
      %p154 = scmp.ne.s32.totalorder %s146, %s149
      %p155 = scmp.eq.s32.totalorder %s12, 0
      %p156 = por %p154, %p155
      %p157 = scmp.ne.s32.totalorder %s146, %s149
      %p158 = scmp.eq.s32.totalorder %s17, 1
      %p159 = por %p157, %p158
      %p160 = scmp.ne.s32.totalorder %s149, %s150
      %p161 = scmp.eq.s32.totalorder %s17, 0
      %p162 = por %p160, %p161
      %p163 = scmp.ne.s32.totalorder %s149, %s150
      %p164 = scmp.eq.s32.totalorder %s18, 1
      %p165 = por %p163, %p164
      %p167 = scmp.ne.s32.totalorder %s150, %s166
      %p168 = scmp.eq.s32.totalorder %s18, 0
      %p169 = por %p167, %p168
      %p170 = scmp.le.s32.totalorder 1, %s12
      %p171 = scmp.lt.s32.totalorder %s12, 3
      %p172 = pnand %p170, %p171
      %p173 = pneg %p172
      // Predicated region
      $region9: #{_lambda_.1} parent=5 // pred_check
        _
      $region10: #{_lambda_.1} parent=5 // pred_check_branch
        %175 = sbr.rel (%p172) target = $region12
      $region11: #{_lambda_.1} parent=5 // pred_region
        %s176 = ssub.s32 %s12, 1
        // Predicated region
        $region13: #{_lambda_.1} parent=11 // pred_check
          %p177 = pneg %p71
        $region14: #{_lambda_.1} parent=11 // pred_check_branch
          %179 = sbr.rel (%p177) target = $region16
        $region15: #{_lambda_.1} parent=11 // pred_region
          _
        $region16: #{_lambda_.1} parent=11 // pred_fallthru
          _
        // Predicated region
        $region17: #{_lambda_.1} parent=11 // pred_check
          %p180 = pneg %p92
        $region18: #{_lambda_.1} parent=11 // pred_check_branch
          %182 = sbr.rel (%p180) target = $region20
        $region19: #{_lambda_.1} parent=11 // pred_region
          _
        $region20: #{_lambda_.1} parent=11 // pred_fallthru
          _
        // Predicated region
        $region21: #{_lambda_.1} parent=11 // pred_check
          %p183 = pneg %p113
        $region22: #{_lambda_.1} parent=11 // pred_check_branch
          %185 = sbr.rel (%p183) target = $region24
        $region23: #{_lambda_.1} parent=11 // pred_region
          %s187 = ssub.s32 3072, 3072
          %188 = vsyncadd [#allocation3], %s187
          %s189 = sshll.u32 [#allocation2], 4
          %s190 = int_to_ptr.vmem [resolvable:$true] %s189
          %195 = dma.hbm_to_vmem [thread:$0]  %s3, 3072, %s190, [#allocation3], 64, 64, 4
        $region24: #{_lambda_.1} parent=11 // pred_fallthru
          _
        // Predicated region
        $region25: #{_lambda_.1} parent=11 // pred_check
          %p196 = pneg %p134
        $region26: #{_lambda_.1} parent=11 // pred_check_branch
          %198 = sbr.rel (%p196) target = $region28
        $region27: #{_lambda_.1} parent=11 // pred_region
          _
        $region28: #{_lambda_.1} parent=11 // pred_fallthru
          _
      $region12: #{_lambda_.1} parent=5 // pred_fallthru
        _
      %p199 = scmp.lt.s32.totalorder %s12, 2
      // Predicated region
      $region29: #{_lambda_.1} parent=5 // pred_check
        %p200 = pneg %p199
      $region30: #{_lambda_.1} parent=5 // pred_check_branch
        %202 = sbr.rel (%p200) target = $region32
      $region31: #{_lambda_.1} parent=5 // pred_region
        // Predicated region
        $region33: #{_lambda_.1} parent=31 // pred_check
          %p203 = pneg %p44
        $region34: #{_lambda_.1} parent=31 // pred_check_branch
          %205 = sbr.rel (%p203) target = $region36
        $region35: #{_lambda_.1} parent=31 // pred_region
          %p206 = scmp.lt.s32.totalorder %s19, 1
          %s207 = scalar_select %p206, %s19, 1
          %s208 = smul.addr %s207, 3
          %s209 = smul.addr %s208, 8
          %s210 = scalar_lea.vmem %s0, %s209
        $region36: #{_lambda_.1} parent=31 // pred_fallthru
          _
      $region32: #{_lambda_.1} parent=5 // pred_fallthru
        _
      %p211 = scmp.le.s32.totalorder 1, %s12
      %p212 = scmp.lt.s32.totalorder %s12, 3
      %p213 = pnand %p211, %p212
      %p214 = pneg %p213
      // Predicated region
      $region37: #{_lambda_.1} parent=5 // pred_check
        _
      $region38: #{_lambda_.1} parent=5 // pred_check_branch
        %216 = sbr.rel (%p213) target = $region40
      $region39: #{_lambda_.1} parent=5 // pred_region
        %s217 = ssub.s32 %s12, 1
        // Predicated region
        $region41: #{_lambda_.1} parent=39 // pred_check
          %p218 = pneg %p113
        $region42: #{_lambda_.1} parent=39 // pred_check_branch
          %220 = sbr.rel (%p218) target = $region44
        $region43: #{_lambda_.1} parent=39 // pred_region
          %221 = dma.done [#allocation3], 3072
        $region44: #{_lambda_.1} parent=39 // pred_fallthru
          _
        %p222 = scmp.lt.s32.totalorder %s21, 1
        %s223 = scalar_select %p222, %s21, 1
        %s224 = smul.addr %s223, 3
        %s225 = smul.addr %s224, 8
        %s226 = scalar_lea.vmem %s0, %s225
        %p227 = pneg %p50
        %p228 = pneg %p47
        %p229 = pneg %p71
        %p230 = pneg %p68
        %p231 = pneg %p92
        %p232 = pneg %p89
        %p233 = pneg %p113
        %p234 = pneg %p110
        %p235 = pneg %p134
        %p236 = pneg %p131
        %p237 = pneg %p162
        %p238 = pneg %p159
        %s239 = smul.u32 2, %s22
        %p240 = scmp.lt.s32.totalorder %s21, 1
        %s241 = scalar_select %p240, %s21, 1
        %p242 = scmp.lt.s32.totalorder %s239, 1
        %s243 = scalar_select %p242, %s239, 1
        %s244 = smul.addr %s241, 2
        %s245 = sadd.s32 %s243, %s244
        %s246 = smul.addr %s245, 8
        %s247 = scalar_lea.vmem %s5, %s246
        %p248 = scmp.lt.s32.totalorder %s21, 1
        %s249 = scalar_select %p248, %s21, 1
        %s250 = smul.addr %s249, 3
        %s251 = smul.addr %s250, 8
        %s252 = scalar_lea.vmem %s0, %s251
        %s253 = smul.u32 2, %s22
        %p254 = scmp.lt.s32.totalorder %s21, 1
        %s255 = scalar_select %p254, %s21, 1
        %p256 = scmp.lt.s32.totalorder %s253, 1
        %s257 = scalar_select %p256, %s253, 1
        %s258 = smul.addr %s255, 2
        %s259 = sadd.s32 %s257, %s258
        %s260 = smul.addr %s259, 8
        %s261 = scalar_lea.vmem %s5, %s260
        %s262 = smul.u32 2, %s22
        %s264 = smul.u32 %s22, 16
        %s265 = scalar_lea.vmem %s252, %s264
        %v266 = vld [vmem:[%s265] sm:$0xff]
        %v267 = vld [vmem:[%s265 + $0x8] sm:$0xff]
        %v268 = vpack.c.bf16 %v267, %v266
        %v269 = vld [vmem:[%s1] sm:$0xff]
        %v270 = vld [vmem:[%s1 + $0x8] sm:$0xf]
        %v271 = vld [vmem:[%s1 + $0xc] sm:$0xff]
        %v272 = vld [vmem:[%s1 + $0x14] sm:$0xf]
        %v273 = vld [vmem:[%s1 + $0x18] sm:$0xff]
        %v274 = vld [vmem:[%s1 + $0x20] sm:$0xf]
        %s275 = sadd.s32 %s264, 1
        %s276 = scalar_lea.vmem %s252, %s275
        %v277 = vld [vmem:[%s276] sm:$0xff]
        %v278 = vld [vmem:[%s276 + $0x8] sm:$0xff]
        %v279 = vpack.c.bf16 %v278, %v277
        %s280 = scalar_lea.vmem %s1, 36
        %v281 = vld [vmem:[%s280] sm:$0xff]
        %v282 = vld [vmem:[%s280 + $0x8] sm:$0xf]
        %v283 = vld [vmem:[%s280 + $0xc] sm:$0xff]
        %v284 = vld [vmem:[%s280 + $0x14] sm:$0xf]
        %v285 = vld [vmem:[%s280 + $0x18] sm:$0xff]
        %v286 = vld [vmem:[%s280 + $0x20] sm:$0xf]
        %v293 = vunpack.c.l.b16 %v281
        %v294 = vunpack.c.h.b16 %v281
        %v295 = vunpack.c.l.b16 %v282
        %v296 = vunpack.c.l.b16 %v283
        %v297 = vunpack.c.h.b16 %v283
        %v298 = vunpack.c.l.b16 %v284
        %v299 = vunpack.c.l.b16 %v285
        %v300 = vunpack.c.h.b16 %v285
        %v301 = vunpack.c.l.b16 %v286
        %v302 = vpack.c.b16 %v296, %v293
        %v303 = vpack.c.b16 %v297, %v294
        %v304 = vpack.c.b16 %v298, %v295
        %v305 = vpack.c.b16 %v299, %v299
        %v306 = vpack.c.b16 %v300, %v300
        %v307 = vpack.c.b16 %v301, %v301
        %vm311 = vcmask 195584
        %v313 = vsel %vm311, %v279, 0
        %vm315 = vcmask 1043456
        %v317 = vsel %vm315, %v305, 0
        %v320 = vsel %vm315, %v306, 0
        %v323 = vsel %vm315, %v307, 0
        %325 = vmatprep.subr.bf16.mxu0 0
        %326 = vmatpush1.bf16.msra.mxu0 0
        %327 = vmatprep.subr.bf16.mxu0 0
        %328 = vmatpush1.bf16.msra.mxu0 0
        %329 = vmatprep.subr.bf16.mxu0 0
        %330 = vmatpush1.bf16.msra.mxu0 0
        %331 = vmatprep.subr.bf16.mxu0 0
        %332 = vmatpush1.bf16.msra.mxu0 0
        %333 = vmatprep.subr.bf16.mxu0 0
        %334 = vmatpush1.bf16.msra.mxu0 0
        %335 = vmatprep.subr.bf16.mxu0 0
        %336 = vmatpush1.bf16.msra.mxu0 0
        %337 = vmatprep.subr.bf16.mxu0 %v320
        %338 = vmatpush1.bf16.msra.mxu0 %v317
        %339 = vmatprep.subr.bf16.mxu0 %v303
        %340 = vmatpush1.bf16.msra.mxu0 %v302
        %341 = vmatprep.subr.bf16.mxu0 0
        %342 = vmatpush2.bf16.msra.mxu0 0
        %343 = vmatprep.subr.bf16.mxu0 0
        %344 = vmatpush2.bf16.msra.mxu0 0
        %345 = vmatprep.subr.bf16.mxu0 0
        %346 = vmatpush2.bf16.msra.mxu0 0
        %347 = vmatprep.subr.bf16.mxu0 0
        %348 = vmatpush2.bf16.msra.mxu0 0
        %349 = vmatprep.subr.bf16.mxu0 0
        %350 = vmatpush2.bf16.msra.mxu0 0
        %351 = vmatprep.subr.bf16.mxu0 0
        %352 = vmatpush2.bf16.msra.mxu0 0
        %353 = vmatprep.subr.bf16.mxu0 0
        %354 = vmatpush2.bf16.msra.mxu0 0
        %355 = vmatprep.subr.bf16.mxu0 0
        %356 = vmatpush2.bf16.msra.mxu0 0
        %357 = vmatprep.mubr.bf16.mxu0 0
        %358 = vmatmul.mubr.bf16.gmra.mxu0 %v313
        %v359 = vpop.f32.mrf.mxu0
        %v360 = vadd.f32 0.0, %v359
        %v361 = vpop.f32.mrf.mxu0
        %v362 = vadd.f32 0.0, %v361
        %v363 = vpop.f32.mrf.mxu0
        %v364 = vadd.f32 0.0, %v363
        %v365 = vpop.f32.mrf.mxu0
        %v366 = vadd.f32 0.0, %v365
        %367 = vdwg.mxu0
        %368 = vmatprep.subr.bf16.mxu0 0
        %369 = vmatpush1.bf16.msra.mxu0 0
        %370 = vmatprep.subr.bf16.mxu0 0
        %371 = vmatpush1.bf16.msra.mxu0 0
        %372 = vmatprep.subr.bf16.mxu0 0
        %373 = vmatpush1.bf16.msra.mxu0 0
        %374 = vmatprep.subr.bf16.mxu0 0
        %375 = vmatpush1.bf16.msra.mxu0 0
        %376 = vmatprep.subr.bf16.mxu0 0
        %377 = vmatpush1.bf16.msra.mxu0 0
        %378 = vmatprep.subr.bf16.mxu0 0
        %379 = vmatpush1.bf16.msra.mxu0 0
        %380 = vmatprep.subr.bf16.mxu0 0
        %381 = vmatpush1.bf16.msra.mxu0 %v323
        %382 = vmatprep.subr.bf16.mxu0 0
        %383 = vmatpush1.bf16.msra.mxu0 %v304
        %384 = vmatprep.subr.bf16.mxu0 0
        %385 = vmatpush2.bf16.msra.mxu0 0
        %386 = vmatprep.subr.bf16.mxu0 0
        %387 = vmatpush2.bf16.msra.mxu0 0
        %388 = vmatprep.subr.bf16.mxu0 0
        %389 = vmatpush2.bf16.msra.mxu0 0
        %390 = vmatprep.subr.bf16.mxu0 0
        %391 = vmatpush2.bf16.msra.mxu0 0
        %392 = vmatprep.subr.bf16.mxu0 0
        %393 = vmatpush2.bf16.msra.mxu0 0
        %394 = vmatprep.subr.bf16.mxu0 0
        %395 = vmatpush2.bf16.msra.mxu0 0
        %396 = vmatprep.subr.bf16.mxu0 0
        %397 = vmatpush2.bf16.msra.mxu0 0
        %398 = vmatprep.subr.bf16.mxu0 0
        %399 = vmatpush2.bf16.msra.mxu0 0
        %400 = vmatprep.mubr.bf16.mxu0 0
        %401 = vmatmul.mubr.bf16.gmra.mxu0 %v313
        %v402 = vpop.f32.mrf.mxu0
        %v403 = vadd.f32 0.0, %v402
        %v404 = vpop.f32.mrf.mxu0
        %v405 = vpop.f32.mrf.mxu0
        %v406 = vadd.f32 0.0, %v405
        %v407 = vpop.f32.mrf.mxu0
        %408 = vdwg.mxu0
        %v415 = vunpack.c.l.b16 %v269
        %v416 = vunpack.c.h.b16 %v269
        %v417 = vunpack.c.l.b16 %v270
        %v418 = vunpack.c.l.b16 %v271
        %v419 = vunpack.c.h.b16 %v271
        %v420 = vunpack.c.l.b16 %v272
        %v421 = vunpack.c.l.b16 %v273
        %v422 = vunpack.c.h.b16 %v273
        %v423 = vunpack.c.l.b16 %v274
        %v424 = vpack.c.b16 %v418, %v415
        %v425 = vpack.c.b16 %v419, %v416
        %v426 = vpack.c.b16 %v420, %v417
        %v427 = vpack.c.b16 %v421, %v421
        %v428 = vpack.c.b16 %v422, %v422
        %v429 = vpack.c.b16 %v423, %v423
        %v434 = vsel %vm311, %v268, 0
        %v437 = vsel %vm315, %v427, 0
        %v440 = vsel %vm315, %v428, 0
        %v443 = vsel %vm315, %v429, 0
        %445 = vmatprep.subr.bf16.mxu0 0
        %446 = vmatpush1.bf16.msra.mxu0 0
        %447 = vmatprep.subr.bf16.mxu0 0
        %448 = vmatpush1.bf16.msra.mxu0 0
        %449 = vmatprep.subr.bf16.mxu0 0
        %450 = vmatpush1.bf16.msra.mxu0 0
        %451 = vmatprep.subr.bf16.mxu0 0
        %452 = vmatpush1.bf16.msra.mxu0 0
        %453 = vmatprep.subr.bf16.mxu0 0
        %454 = vmatpush1.bf16.msra.mxu0 0
        %455 = vmatprep.subr.bf16.mxu0 0
        %456 = vmatpush1.bf16.msra.mxu0 0
        %457 = vmatprep.subr.bf16.mxu0 %v440
        %458 = vmatpush1.bf16.msra.mxu0 %v437
        %459 = vmatprep.subr.bf16.mxu0 %v425
        %460 = vmatpush1.bf16.msra.mxu0 %v424
        %461 = vmatprep.subr.bf16.mxu0 0
        %462 = vmatpush2.bf16.msra.mxu0 0
        %463 = vmatprep.subr.bf16.mxu0 0
        %464 = vmatpush2.bf16.msra.mxu0 0
        %465 = vmatprep.subr.bf16.mxu0 0
        %466 = vmatpush2.bf16.msra.mxu0 0
        %467 = vmatprep.subr.bf16.mxu0 0
        %468 = vmatpush2.bf16.msra.mxu0 0
        %469 = vmatprep.subr.bf16.mxu0 0
        %470 = vmatpush2.bf16.msra.mxu0 0
        %471 = vmatprep.subr.bf16.mxu0 0
        %472 = vmatpush2.bf16.msra.mxu0 0
        %473 = vmatprep.subr.bf16.mxu0 0
        %474 = vmatpush2.bf16.msra.mxu0 0
        %475 = vmatprep.subr.bf16.mxu0 0
        %476 = vmatpush2.bf16.msra.mxu0 0
        %477 = vmatprep.mubr.bf16.mxu0 0
        %478 = vmatmul.mubr.bf16.gmra.mxu0 %v434
        %v479 = vpop.f32.mrf.mxu0
        %v480 = vadd.f32 %v360, %v479
        %v481 = vpop.f32.mrf.mxu0
        %v482 = vadd.f32 %v362, %v481
        %v483 = vpop.f32.mrf.mxu0
        %v484 = vadd.f32 %v364, %v483
        %v485 = vpop.f32.mrf.mxu0
        %v486 = vadd.f32 %v366, %v485
        %487 = vdwg.mxu0
        %488 = vmatprep.subr.bf16.mxu0 0
        %489 = vmatpush1.bf16.msra.mxu0 0
        %490 = vmatprep.subr.bf16.mxu0 0
        %491 = vmatpush1.bf16.msra.mxu0 0
        %492 = vmatprep.subr.bf16.mxu0 0
        %493 = vmatpush1.bf16.msra.mxu0 0
        %494 = vmatprep.subr.bf16.mxu0 0
        %495 = vmatpush1.bf16.msra.mxu0 0
        %496 = vmatprep.subr.bf16.mxu0 0
        %497 = vmatpush1.bf16.msra.mxu0 0
        %498 = vmatprep.subr.bf16.mxu0 0
        %499 = vmatpush1.bf16.msra.mxu0 0
        %500 = vmatprep.subr.bf16.mxu0 0
        %501 = vmatpush1.bf16.msra.mxu0 %v443
        %502 = vmatprep.subr.bf16.mxu0 0
        %503 = vmatpush1.bf16.msra.mxu0 %v426
        %504 = vmatprep.subr.bf16.mxu0 0
        %505 = vmatpush2.bf16.msra.mxu0 0
        %506 = vmatprep.subr.bf16.mxu0 0
        %507 = vmatpush2.bf16.msra.mxu0 0
        %508 = vmatprep.subr.bf16.mxu0 0
        %509 = vmatpush2.bf16.msra.mxu0 0
        %510 = vmatprep.subr.bf16.mxu0 0
        %511 = vmatpush2.bf16.msra.mxu0 0
        %512 = vmatprep.subr.bf16.mxu0 0
        %513 = vmatpush2.bf16.msra.mxu0 0
        %514 = vmatprep.subr.bf16.mxu0 0
        %515 = vmatpush2.bf16.msra.mxu0 0
        %516 = vmatprep.subr.bf16.mxu0 0
        %517 = vmatpush2.bf16.msra.mxu0 0
        %518 = vmatprep.subr.bf16.mxu0 0
        %519 = vmatpush2.bf16.msra.mxu0 0
        %520 = vmatprep.mubr.bf16.mxu0 0
        %521 = vmatmul.mubr.bf16.gmra.mxu0 %v434
        %v522 = vpop.f32.mrf.mxu0
        %v523 = vadd.f32 %v403, %v522
        %v524 = vpop.f32.mrf.mxu0
        %v525 = vpop.f32.mrf.mxu0
        %v526 = vadd.f32 %v406, %v525
        %v527 = vpop.f32.mrf.mxu0
        %528 = vdwg.mxu0
        %s529 = sadd.s32 %s264, 2
        %s530 = scalar_lea.vmem %s252, %s529
        %v531 = vld [vmem:[%s530] sm:$0xff]
        %v532 = vld [vmem:[%s530 + $0x8] sm:$0xff]
        %v533 = vpack.c.bf16 %v532, %v531
        %s534 = scalar_lea.vmem %s1, 72
        %v535 = vld [vmem:[%s534] sm:$0xff]
        %v536 = vld [vmem:[%s534 + $0x8] sm:$0xf]
        %v537 = vld [vmem:[%s534 + $0xc] sm:$0xff]
        %v538 = vld [vmem:[%s534 + $0x14] sm:$0xf]
        %v539 = vld [vmem:[%s534 + $0x18] sm:$0xff]
        %v540 = vld [vmem:[%s534 + $0x20] sm:$0xf]
        %v547 = vunpack.c.l.b16 %v535
        %v548 = vunpack.c.h.b16 %v535
        %v549 = vunpack.c.l.b16 %v536
        %v550 = vunpack.c.l.b16 %v537
        %v551 = vunpack.c.h.b16 %v537
        %v552 = vunpack.c.l.b16 %v538
        %v553 = vunpack.c.l.b16 %v539
        %v554 = vunpack.c.h.b16 %v539
        %v555 = vunpack.c.l.b16 %v540
        %v556 = vpack.c.b16 %v550, %v547
        %v557 = vpack.c.b16 %v551, %v548
        %v558 = vpack.c.b16 %v552, %v549
        %v559 = vpack.c.b16 %v553, %v553
        %v560 = vpack.c.b16 %v554, %v554
        %v561 = vpack.c.b16 %v555, %v555
        %v566 = vsel %vm311, %v533, 0
        %v569 = vsel %vm315, %v559, 0
        %v572 = vsel %vm315, %v560, 0
        %v575 = vsel %vm315, %v561, 0
        %577 = vmatprep.subr.bf16.mxu0 0
        %578 = vmatpush1.bf16.msra.mxu0 0
        %579 = vmatprep.subr.bf16.mxu0 0
        %580 = vmatpush1.bf16.msra.mxu0 0
        %581 = vmatprep.subr.bf16.mxu0 0
        %582 = vmatpush1.bf16.msra.mxu0 0
        %583 = vmatprep.subr.bf16.mxu0 0
        %584 = vmatpush1.bf16.msra.mxu0 0
        %585 = vmatprep.subr.bf16.mxu0 0
        %586 = vmatpush1.bf16.msra.mxu0 0
        %587 = vmatprep.subr.bf16.mxu0 0
        %588 = vmatpush1.bf16.msra.mxu0 0
        %589 = vmatprep.subr.bf16.mxu0 %v572
        %590 = vmatpush1.bf16.msra.mxu0 %v569
        %591 = vmatprep.subr.bf16.mxu0 %v557
        %592 = vmatpush1.bf16.msra.mxu0 %v556
        %593 = vmatprep.subr.bf16.mxu0 0
        %594 = vmatpush2.bf16.msra.mxu0 0
        %595 = vmatprep.subr.bf16.mxu0 0
        %596 = vmatpush2.bf16.msra.mxu0 0
        %597 = vmatprep.subr.bf16.mxu0 0
        %598 = vmatpush2.bf16.msra.mxu0 0
        %599 = vmatprep.subr.bf16.mxu0 0
        %600 = vmatpush2.bf16.msra.mxu0 0
        %601 = vmatprep.subr.bf16.mxu0 0
        %602 = vmatpush2.bf16.msra.mxu0 0
        %603 = vmatprep.subr.bf16.mxu0 0
        %604 = vmatpush2.bf16.msra.mxu0 0
        %605 = vmatprep.subr.bf16.mxu0 0
        %606 = vmatpush2.bf16.msra.mxu0 0
        %607 = vmatprep.subr.bf16.mxu0 0
        %608 = vmatpush2.bf16.msra.mxu0 0
        %609 = vmatprep.mubr.bf16.mxu0 0
        %610 = vmatmul.mubr.bf16.gmra.mxu0 %v566
        %v611 = vpop.f32.mrf.mxu0
        %v612 = vadd.f32 0.0, %v611
        %v613 = vpop.f32.mrf.mxu0
        %v614 = vadd.f32 0.0, %v613
        %v615 = vpop.f32.mrf.mxu0
        %v616 = vadd.f32 0.0, %v615
        %v617 = vpop.f32.mrf.mxu0
        %v618 = vadd.f32 0.0, %v617
        %619 = vdwg.mxu0
        %620 = vmatprep.subr.bf16.mxu0 0
        %621 = vmatpush1.bf16.msra.mxu0 0
        %622 = vmatprep.subr.bf16.mxu0 0
        %623 = vmatpush1.bf16.msra.mxu0 0
        %624 = vmatprep.subr.bf16.mxu0 0
        %625 = vmatpush1.bf16.msra.mxu0 0
        %626 = vmatprep.subr.bf16.mxu0 0
        %627 = vmatpush1.bf16.msra.mxu0 0
        %628 = vmatprep.subr.bf16.mxu0 0
        %629 = vmatpush1.bf16.msra.mxu0 0
        %630 = vmatprep.subr.bf16.mxu0 0
        %631 = vmatpush1.bf16.msra.mxu0 0
        %632 = vmatprep.subr.bf16.mxu0 0
        %633 = vmatpush1.bf16.msra.mxu0 %v575
        %634 = vmatprep.subr.bf16.mxu0 0
        %635 = vmatpush1.bf16.msra.mxu0 %v558
        %636 = vmatprep.subr.bf16.mxu0 0
        %637 = vmatpush2.bf16.msra.mxu0 0
        %638 = vmatprep.subr.bf16.mxu0 0
        %639 = vmatpush2.bf16.msra.mxu0 0
        %640 = vmatprep.subr.bf16.mxu0 0
        %641 = vmatpush2.bf16.msra.mxu0 0
        %642 = vmatprep.subr.bf16.mxu0 0
        %643 = vmatpush2.bf16.msra.mxu0 0
        %644 = vmatprep.subr.bf16.mxu0 0
        %645 = vmatpush2.bf16.msra.mxu0 0
        %646 = vmatprep.subr.bf16.mxu0 0
        %647 = vmatpush2.bf16.msra.mxu0 0
        %648 = vmatprep.subr.bf16.mxu0 0
        %649 = vmatpush2.bf16.msra.mxu0 0
        %650 = vmatprep.subr.bf16.mxu0 0
        %651 = vmatpush2.bf16.msra.mxu0 0
        %652 = vmatprep.mubr.bf16.mxu0 0
        %653 = vmatmul.mubr.bf16.gmra.mxu0 %v566
        %v654 = vpop.f32.mrf.mxu0
        %v655 = vadd.f32 0.0, %v654
        %v656 = vpop.f32.mrf.mxu0
        %v657 = vpop.f32.mrf.mxu0
        %v658 = vadd.f32 0.0, %v657
        %v659 = vpop.f32.mrf.mxu0
        %660 = vdwg.mxu0
        %v661 = vadd.f32 %v480, %v612
        %v662 = vadd.f32 %v482, %v614
        %v663 = vadd.f32 %v523, %v655
        %v664 = vadd.f32 %v484, %v616
        %v665 = vadd.f32 %v486, %v618
        %v666 = vadd.f32 %v526, %v658
        %v667 = vld [vmem:[%s2] sm:$0x7]
        %v669 = vlaneseq
        %v670 = vshrl.u32 %v669, 7
        %v671 = vsub.s32 0, %v670
        %v672 = vrot.slane %v667, %v671
        %v673 = vlaneseq
        %v674 = vshrl.u32 %v673, 7
        %v675 = vsub.s32 1, %v674
        %v676 = vrot.slane %v667, %v675
        %v677 = vlaneseq
        %v678 = vshrl.u32 %v677, 7
        %v679 = vsub.s32 2, %v678
        %v680 = vrot.slane %v667, %v679
        %v684 = vadd.f32 %v661, %v672
        %v685 = vadd.f32 %v662, %v676
        %v686 = vadd.f32 %v663, %v680
        %v687 = vadd.f32 %v664, %v672
        %v688 = vadd.f32 %v665, %v676
        %v689 = vadd.f32 %v666, %v680
        %v690 = vmax.f32 %v684, 0.0
        %v691 = vmax.f32 %v685, 0.0
        %v692 = vmax.f32 %v686, 0.0
        %v693 = vmax.f32 %v687, 0.0
        %v694 = vmax.f32 %v688, 0.0
        %v695 = vmax.f32 %v689, 0.0
        %v696 = vpack.c.bf16 %v693, %v690
        %v697 = vpack.c.bf16 %v694, %v691
        %v698 = vpack.c.bf16 %v695, %v692
        %v699 = vld [vmem:[#allocation2] sm:$0xf]
        %v700 = vld [vmem:[#allocation2 + $0x4] sm:$0xf]
        %v701 = vld [vmem:[#allocation2 + $0x8] sm:$0xf]
        %v702 = vld [vmem:[#allocation2 + $0xc] sm:$0xf]
        %v703 = vld [vmem:[#allocation2 + $0x10] sm:$0xf]
        %v704 = vld [vmem:[#allocation2 + $0x14] sm:$0xf]
        %v705 = vld [vmem:[#allocation2 + $0x18] sm:$0xf]
        %v706 = vld [vmem:[#allocation2 + $0x1c] sm:$0xf]
        %v707 = vld [vmem:[#allocation2 + $0x20] sm:$0xf]
        %v708 = vld [vmem:[#allocation2 + $0x24] sm:$0xf]
        %v709 = vld [vmem:[#allocation2 + $0x28] sm:$0xf]
        %v710 = vld [vmem:[#allocation2 + $0x2c] sm:$0xf]
        %v711 = vld [vmem:[#allocation2 + $0x30] sm:$0xf]
        %v712 = vld [vmem:[#allocation2 + $0x34] sm:$0xf]
        %v713 = vld [vmem:[#allocation2 + $0x38] sm:$0xf]
        %v714 = vld [vmem:[#allocation2 + $0x3c] sm:$0xf]
        %v715 = vld [vmem:[#allocation2 + $0x40] sm:$0xf]
        %v716 = vld [vmem:[#allocation2 + $0x44] sm:$0xf]
        %v717 = vld [vmem:[#allocation2 + $0x48] sm:$0xf]
        %v718 = vld [vmem:[#allocation2 + $0x4c] sm:$0xf]
        %v719 = vld [vmem:[#allocation2 + $0x50] sm:$0xf]
        %v720 = vld [vmem:[#allocation2 + $0x54] sm:$0xf]
        %v721 = vld [vmem:[#allocation2 + $0x58] sm:$0xf]
        %v722 = vld [vmem:[#allocation2 + $0x5c] sm:$0xf]
        %v723 = vld [vmem:[#allocation2 + $0x60] sm:$0xf]
        %v724 = vld [vmem:[#allocation2 + $0x64] sm:$0xf]
        %v725 = vld [vmem:[#allocation2 + $0x68] sm:$0xf]
        %v726 = vld [vmem:[#allocation2 + $0x6c] sm:$0xf]
        %v727 = vld [vmem:[#allocation2 + $0x70] sm:$0xf]
        %v728 = vld [vmem:[#allocation2 + $0x74] sm:$0xf]
        %v729 = vld [vmem:[#allocation2 + $0x78] sm:$0xf]
        %v730 = vld [vmem:[#allocation2 + $0x7c] sm:$0xf]
        %v731 = vld [vmem:[#allocation2 + $0x80] sm:$0xf]
        %v732 = vld [vmem:[#allocation2 + $0x84] sm:$0xf]
        %v733 = vld [vmem:[#allocation2 + $0x88] sm:$0xf]
        %v734 = vld [vmem:[#allocation2 + $0x8c] sm:$0xf]
        %v735 = vld [vmem:[#allocation2 + $0x90] sm:$0xf]
        %v736 = vld [vmem:[#allocation2 + $0x94] sm:$0xf]
        %v737 = vld [vmem:[#allocation2 + $0x98] sm:$0xf]
        %v738 = vld [vmem:[#allocation2 + $0x9c] sm:$0xf]
        %v739 = vld [vmem:[#allocation2 + $0xa0] sm:$0xf]
        %v740 = vld [vmem:[#allocation2 + $0xa4] sm:$0xf]
        %v741 = vld [vmem:[#allocation2 + $0xa8] sm:$0xf]
        %v742 = vld [vmem:[#allocation2 + $0xac] sm:$0xf]
        %v743 = vld [vmem:[#allocation2 + $0xb0] sm:$0xf]
        %v744 = vld [vmem:[#allocation2 + $0xb4] sm:$0xf]
        %v745 = vld [vmem:[#allocation2 + $0xb8] sm:$0xf]
        %v746 = vld [vmem:[#allocation2 + $0xbc] sm:$0xf]
        %v747 = vld [vmem:[%s4] sm:$0x1]
        %v749 = vlaneseq
        %v750 = vshrl.u32 %v749, 7
        %v751 = vsub.s32 0, %v750
        %v752 = vrot.slane %v747, %v751
        %v802 = vunpack.c.l.b16 %v699
        %v803 = vunpack.c.l.b16 %v700
        %v804 = vunpack.c.l.b16 %v701
        %v805 = vunpack.c.l.b16 %v702
        %v806 = vunpack.c.l.b16 %v703
        %v807 = vunpack.c.l.b16 %v704
        %v808 = vunpack.c.l.b16 %v705
        %v809 = vunpack.c.l.b16 %v706
        %v810 = vunpack.c.l.b16 %v707
        %v811 = vunpack.c.l.b16 %v708
        %v812 = vunpack.c.l.b16 %v709
        %v813 = vunpack.c.l.b16 %v710
        %v814 = vunpack.c.l.b16 %v711
        %v815 = vunpack.c.l.b16 %v712
        %v816 = vunpack.c.l.b16 %v713
        %v817 = vunpack.c.l.b16 %v714
        %v818 = vunpack.c.l.b16 %v715
        %v819 = vunpack.c.l.b16 %v716
        %v820 = vunpack.c.l.b16 %v717
        %v821 = vunpack.c.l.b16 %v718
        %v822 = vunpack.c.l.b16 %v719
        %v823 = vunpack.c.l.b16 %v720
        %v824 = vunpack.c.l.b16 %v721
        %v825 = vunpack.c.l.b16 %v722
        %v826 = vunpack.c.l.b16 %v723
        %v827 = vunpack.c.l.b16 %v724
        %v828 = vunpack.c.l.b16 %v725
        %v829 = vunpack.c.l.b16 %v726
        %v830 = vunpack.c.l.b16 %v727
        %v831 = vunpack.c.l.b16 %v728
        %v832 = vunpack.c.l.b16 %v729
        %v833 = vunpack.c.l.b16 %v730
        %v834 = vunpack.c.l.b16 %v731
        %v835 = vunpack.c.l.b16 %v732
        %v836 = vunpack.c.l.b16 %v733
        %v837 = vunpack.c.l.b16 %v734
        %v838 = vunpack.c.l.b16 %v735
        %v839 = vunpack.c.l.b16 %v736
        %v840 = vunpack.c.l.b16 %v737
        %v841 = vunpack.c.l.b16 %v738
        %v842 = vunpack.c.l.b16 %v739
        %v843 = vunpack.c.l.b16 %v740
        %v844 = vunpack.c.l.b16 %v741
        %v845 = vunpack.c.l.b16 %v742
        %v846 = vunpack.c.l.b16 %v743
        %v847 = vunpack.c.l.b16 %v744
        %v848 = vunpack.c.l.b16 %v745
        %v849 = vunpack.c.l.b16 %v746
        %v850 = vpack.c.b16 %v803, %v802
        %v851 = vpack.c.b16 %v805, %v804
        %v852 = vpack.c.b16 %v807, %v806
        %v853 = vpack.c.b16 %v809, %v808
        %v854 = vpack.c.b16 %v811, %v810
        %v855 = vpack.c.b16 %v813, %v812
        %v856 = vpack.c.b16 %v815, %v814
        %v857 = vpack.c.b16 %v817, %v816
        %v858 = vpack.c.b16 %v819, %v818
        %v859 = vpack.c.b16 %v821, %v820
        %v860 = vpack.c.b16 %v823, %v822
        %v861 = vpack.c.b16 %v825, %v824
        %v862 = vpack.c.b16 %v827, %v826
        %v863 = vpack.c.b16 %v829, %v828
        %v864 = vpack.c.b16 %v831, %v830
        %v865 = vpack.c.b16 %v833, %v832
        %v866 = vpack.c.b16 %v835, %v834
        %v867 = vpack.c.b16 %v837, %v836
        %v868 = vpack.c.b16 %v839, %v838
        %v869 = vpack.c.b16 %v841, %v840
        %v870 = vpack.c.b16 %v843, %v842
        %v871 = vpack.c.b16 %v845, %v844
        %v872 = vpack.c.b16 %v847, %v846
        %v873 = vpack.c.b16 %v849, %v848
        %898 = vmatprep.subr.bf16.mxu0 0
        %899 = vmatpush1.bf16.msra.mxu0 %v857
        %900 = vmatprep.subr.bf16.mxu0 0
        %901 = vmatpush1.bf16.msra.mxu0 %v856
        %902 = vmatprep.subr.bf16.mxu0 0
        %903 = vmatpush1.bf16.msra.mxu0 %v855
        %904 = vmatprep.subr.bf16.mxu0 0
        %905 = vmatpush1.bf16.msra.mxu0 %v854
        %906 = vmatprep.subr.bf16.mxu0 0
        %907 = vmatpush1.bf16.msra.mxu0 %v853
        %908 = vmatprep.subr.bf16.mxu0 0
        %909 = vmatpush1.bf16.msra.mxu0 %v852
        %910 = vmatprep.subr.bf16.mxu0 0
        %911 = vmatpush1.bf16.msra.mxu0 %v851
        %912 = vmatprep.subr.bf16.mxu0 0
        %913 = vmatpush1.bf16.msra.mxu0 %v850
        %914 = vmatprep.subr.bf16.mxu0 0
        %915 = vmatpush2.bf16.msra.mxu0 %v865
        %916 = vmatprep.subr.bf16.mxu0 0
        %917 = vmatpush2.bf16.msra.mxu0 %v864
        %918 = vmatprep.subr.bf16.mxu0 0
        %919 = vmatpush2.bf16.msra.mxu0 %v863
        %920 = vmatprep.subr.bf16.mxu0 0
        %921 = vmatpush2.bf16.msra.mxu0 %v862
        %922 = vmatprep.subr.bf16.mxu0 0
        %923 = vmatpush2.bf16.msra.mxu0 %v861
        %924 = vmatprep.subr.bf16.mxu0 0
        %925 = vmatpush2.bf16.msra.mxu0 %v860
        %926 = vmatprep.subr.bf16.mxu0 0
        %927 = vmatpush2.bf16.msra.mxu0 %v859
        %928 = vmatprep.subr.bf16.mxu0 0
        %929 = vmatpush2.bf16.msra.mxu0 %v858
        %930 = vmatprep.mubr.bf16.mxu0 %v697
        %931 = vmatmul.mubr.bf16.gmra.mxu0 %v696
        %v932 = vpop.f32.mrf.mxu0
        %v933 = vadd.f32 %v752, %v932
        %v934 = vpop.f32.mrf.mxu0
        %v935 = vpop.f32.mrf.mxu0
        %v936 = vadd.f32 %v752, %v935
        %v937 = vpop.f32.mrf.mxu0
        %938 = vdwg.mxu0
        %939 = vmatprep.subr.bf16.mxu0 0
        %940 = vmatpush1.bf16.msra.mxu0 %v873
        %941 = vmatprep.subr.bf16.mxu0 0
        %942 = vmatpush1.bf16.msra.mxu0 %v872
        %943 = vmatprep.subr.bf16.mxu0 0
        %944 = vmatpush1.bf16.msra.mxu0 %v871
        %945 = vmatprep.subr.bf16.mxu0 0
        %946 = vmatpush1.bf16.msra.mxu0 %v870
        %947 = vmatprep.subr.bf16.mxu0 0
        %948 = vmatpush1.bf16.msra.mxu0 %v869
        %949 = vmatprep.subr.bf16.mxu0 0
        %950 = vmatpush1.bf16.msra.mxu0 %v868
        %951 = vmatprep.subr.bf16.mxu0 0
        %952 = vmatpush1.bf16.msra.mxu0 %v867
        %953 = vmatprep.subr.bf16.mxu0 0
        %954 = vmatpush1.bf16.msra.mxu0 %v866
        %955 = vmatprep.subr.bf16.mxu0 0
        %956 = vmatpush2.bf16.msra.mxu0 0
        %957 = vmatprep.subr.bf16.mxu0 0
        %958 = vmatpush2.bf16.msra.mxu0 0
        %959 = vmatprep.subr.bf16.mxu0 0
        %960 = vmatpush2.bf16.msra.mxu0 0
        %961 = vmatprep.subr.bf16.mxu0 0
        %962 = vmatpush2.bf16.msra.mxu0 0
        %963 = vmatprep.subr.bf16.mxu0 0
        %964 = vmatpush2.bf16.msra.mxu0 0
        %965 = vmatprep.subr.bf16.mxu0 0
        %966 = vmatpush2.bf16.msra.mxu0 0
        %967 = vmatprep.subr.bf16.mxu0 0
        %968 = vmatpush2.bf16.msra.mxu0 0
        %969 = vmatprep.subr.bf16.mxu0 0
        %970 = vmatpush2.bf16.msra.mxu0 0
        %971 = vmatprep.mubr.bf16.mxu0 0
        %972 = vmatmul.mubr.bf16.gmra.mxu0 %v698
        %v973 = vpop.f32.mrf.mxu0
        %v974 = vadd.f32 %v933, %v973
        %v975 = vpop.f32.mrf.mxu0
        %v976 = vpop.f32.mrf.mxu0
        %v977 = vadd.f32 %v936, %v976
        %v978 = vpop.f32.mrf.mxu0
        %979 = vdwg.mxu0
        %980 = vst [vmem:[%s261] sm:$0xff] %v974
        %981 = vst [vmem:[%s261 + $0x8] sm:$0xff] %v977
        %s982 = smul.u32 2, %s22
        %p983 = scmp.lt.s32.totalorder %s21, 1
        %s984 = scalar_select %p983, %s21, 1
        %p985 = scmp.lt.s32.totalorder %s982, 1
        %s986 = scalar_select %p985, %s982, 1
        %s987 = smul.addr %s984, 2
        %s988 = sadd.s32 %s986, %s987
        %s989 = smul.addr %s988, 8
        %s990 = scalar_lea.vmem %s5, %s989
        // Predicated region
        $region45: #{_lambda_.1} parent=39 // pred_check
          %p991 = pneg %p159
        $region46: #{_lambda_.1} parent=39 // pred_check_branch
          %993 = sbr.rel (%p991) target = $region48
        $region47: #{_lambda_.1} parent=39 // pred_region
          %s994 = smul.u32 2, %s22
        $region48: #{_lambda_.1} parent=39 // pred_fallthru
          _
      $region40: #{_lambda_.1} parent=5 // pred_fallthru
        _
      %p995 = scmp.le.s32.totalorder 2, %s12
      // Predicated region
      $region49: #{_lambda_.1} parent=5 // pred_check
        %p996 = pneg %p995
      $region50: #{_lambda_.1} parent=5 // pred_check_branch
        %998 = sbr.rel (%p996) target = $region52
      $region51: #{_lambda_.1} parent=5 // pred_region
        %s999 = ssub.s32 %s12, 2
        // Predicated region
        $region53: #{_lambda_.1} parent=51 // pred_check
          %p1000 = pneg %p165
        $region54: #{_lambda_.1} parent=51 // pred_check_branch
          %1002 = sbr.rel (%p1000) target = $region56
        $region55: #{_lambda_.1} parent=51 // pred_region
          %s1003 = smul.u32 2, %s24
          %p1004 = scmp.lt.s32.totalorder %s23, 1
          %s1005 = scalar_select %p1004, %s23, 1
          %p1006 = scmp.lt.s32.totalorder %s1003, 1
          %s1007 = scalar_select %p1006, %s1003, 1
          %s1008 = smul.addr %s1005, 2
          %s1009 = sadd.s32 %s1007, %s1008
          %s1010 = smul.addr %s1009, 8
          %s1011 = scalar_lea.vmem %s5, %s1010
        $region56: #{_lambda_.1} parent=51 // pred_fallthru
          _
      $region52: #{_lambda_.1} parent=5 // pred_fallthru
        _
    $region6: #{_lambda_.1} parent=1 // loop_footer
      %s16 = sadd.s32 1, %s12
    $region7: #{_lambda_.1} parent=1 // loop_footer_branch
      %11 = sbr.rel target = $region3
    $region8: #{_lambda_.1} parent=1 // loop_exit
      _
    %1012 = vsyncpa [#allocation3], 1
    %s1013 = scalar_lea.sflag [#allocation3], 1
    %1014 = vsyncpa %s1013, 1

</llo_original>
